<compile_context>
chip_gen: v7x
topology: tpu7x:2x2x1
jax: 0.10.0
libtpu: 0.0.40
codegen_flags: <defaults>
</compile_context>

<pallas_src>
import math

import jax
import jax.numpy as jnp
from jax.experimental import pallas as pl
from jax.experimental.pallas import tpu as pltpu


def _round_up(v, m):
    return (v + m - 1) // m * m


def _torgb_kernel(mw_ref, x_ref, bias_ref, out_ref):
    # mw_ref  : (BLOCK_B, C)         per-batch modulated 1x1 conv weight (f32)
    # x_ref   : (BLOCK_B, C, T_HW)   feature tile (input dtype)
    # bias_ref: (1, 1)               ToRGB bias scalar (SMEM, f32)
    # out_ref : (BLOCK_B, T_HW)
    x = x_ref[...].astype(jnp.float32)
    mw = mw_ref[...]                                   # (BLOCK_B, C), f32
    # Per-batch channel reduction: VPU broadcast-multiply + XLU sublane sum.
    y = jnp.sum(x * mw[:, :, None], axis=1)            # (BLOCK_B, T_HW), f32
    out_ref[...] = (y + bias_ref[0, 0]).astype(out_ref.dtype)


def to_rgb(x, style, w_mod, b_mod, conv_w, bias, *, lr_mul=1.0):
    """ToRGB forward (skip=None).

    x      : (B, C, H, W)  NCHW feature map (any float dtype)
    style  : (B, S)        style vectors
    w_mod  : (C, S)        EqualLinear weight (out_dim=C, in_dim=S)
    b_mod  : (C,)          EqualLinear bias (init 1.0)
    conv_w : (1, 1, C, 1, 1) ModulatedConv2d weight (out_channel=1, k=1)
    bias   : (1, 1, 1, 1)  ToRGB bias
    returns: (B, 1, H, W)  same dtype as x
    """
    B, C, H, W = x.shape
    S = style.shape[1]
    HW = H * W
    scale = (1.0 / math.sqrt(S)) * lr_mul

    # ---- hoisted style modulation: one batched XLA matmul, done once -------
    s = jnp.dot(style.astype(jnp.float32),
                (jnp.asarray(w_mod, jnp.float32) * scale).T)          # (B, C)
    s = s + jnp.asarray(b_mod, jnp.float32)[None, :] * lr_mul
    mw = s * jnp.asarray(conv_w, jnp.float32).reshape(1, C)           # (B, C)

    # ---- tiling -------------------------------------------------------------
    itemsize = jnp.dtype(x.dtype).itemsize
    block_b = 8 if B >= 8 else B                 # sublane-dense output when possible
    b_pad = _round_up(B, block_b)

    hw128 = _round_up(HW, 128)
    budget = 4 * 1024 * 1024                     # target bytes per x VMEM buffer
    max_tile = max(128, (budget // max(1, block_b * C * itemsize)) // 128 * 128)
    tile_hw = min(hw128, max_tile, 8192)
    hw_pad = _round_up(hw128, tile_hw)

    x_flat = x.reshape(B, C, HW)
    if b_pad != B or hw_pad != HW:
        x_flat = jnp.pad(x_flat, ((0, b_pad - B), (0, 0), (0, hw_pad - HW)))
    if b_pad != B:
        mw = jnp.pad(mw, ((0, b_pad - B), (0, 0)))

    bias_2d = jnp.asarray(bias, jnp.float32).reshape(1, 1)

    grid = (b_pad // block_b, hw_pad // tile_hw)

    out_flat = pl.pallas_call(
        _torgb_kernel,
        out_shape=jax.ShapeDtypeStruct((b_pad, hw_pad), x.dtype),
        grid_spec=pltpu.PrefetchScalarGridSpec(
            num_scalar_prefetch=0,
            grid=grid,
            in_specs=[
                pl.BlockSpec((block_b, C), lambda b, t: (b, 0)),              # mw
                pl.BlockSpec((block_b, C, tile_hw), lambda b, t: (b, 0, t)),  # x
                pl.BlockSpec(memory_space=pltpu.MemorySpace.SMEM),            # bias
            ],
            out_specs=pl.BlockSpec((block_b, tile_hw), lambda b, t: (b, t)),
        ),
        compiler_params=pltpu.CompilerParams(
            dimension_semantics=("parallel", "parallel"),
            vmem_limit_bytes=32 * 1024 * 1024,
        ),
    )(mw, x_flat, bias_2d)

    return out_flat[:B, :HW].reshape(B, 1, H, W)


def to_rgb_reference(x, style, w_mod, b_mod, conv_w, bias, *, lr_mul=1.0):
    """Pure-JAX reference mirroring the PyTorch module (skip=None)."""
    B, C, H, W = x.shape
    S = style.shape[1]
    scale = (1.0 / math.sqrt(S)) * lr_mul
    s = style @ (w_mod * scale).T + b_mod * lr_mul            # (B, C)
    mw = conv_w.reshape(1, C) * s                             # (B, C)
    out = jnp.einsum('bc,bchw->bhw', mw, x)[:, None]          # (B, 1, H, W)
    return out + bias.reshape(1, 1, 1, 1)


if __name__ == "__main__":
    key = jax.random.PRNGKey(0)
    k_x, k_s, k_wm, k_cw = jax.random.split(key, 4)

    # Small shapes consistent with the module.
    B, C, H, W, S = 2, 4, 16, 16, 8

    x = jax.random.normal(k_x, (B, C, H, W), jnp.float32)
    style = jax.random.normal(k_s, (B, S), jnp.float32)

    # Deterministic parameter init (mirrors __init__ shapes):
    #   EqualLinear(style_dim -> in_channel, bias_init=1, lr_mul=1)
    w_mod = jax.random.normal(k_wm, (C, S), jnp.float32)      # randn(out_dim, in_dim)
    b_mod = jnp.ones((C,), jnp.float32)                       # bias_init = 1
    #   ModulatedConv2d weight: randn(1, out_channel=1, in_channel, 1, 1)
    conv_w = jax.random.normal(k_cw, (1, 1, C, 1, 1), jnp.float32)
    #   ToRGB bias: zeros(1,1,1,1)
    bias = jnp.zeros((1, 1, 1, 1), jnp.float32)

    out = to_rgb(x, style, w_mod, b_mod, conv_w, bias)
    out = jax.block_until_ready(out)

    ref = to_rgb_reference(x, style, w_mod, b_mod, conv_w, bias)
    assert out.shape == (B, 1, H, W)
    assert jnp.allclose(out, ref, atol=1e-4, rtol=1e-4), "mismatch vs reference"

    print("KERNEL_OK")
</pallas_src>

<mosaic_0001>
module attributes {stable_mosaic.version = 11 : i64} {
  func.func @_torgb_kernel(%arg0: i32, %arg1: i32, %arg2: memref<2x4xf32, #tpu.memory_space<vmem>>, %arg3: memref<2x4x256xf32, #tpu.memory_space<vmem>>, %arg4: memref<1x1xf32, #tpu.memory_space<smem>>, %arg5: memref<2x256xf32, #tpu.memory_space<vmem>>) attributes {dimension_semantics = [#tpu.dimension_semantics<parallel>, #tpu.dimension_semantics<parallel>], iteration_bounds = array<i64: 1, 1>, scalar_prefetch = 0 : i64, scratch_operands = 0 : i64, tpu.core_type = #tpu.core_type<tc>, window_params = [{transform_indices = @transform_0, window_bounds = array<i64: 2, 4>}, {transform_indices = @transform_1, window_bounds = array<i64: 2, 4, 256>}, {transform_indices = @transform_2, window_bounds = array<i64: 1, 1>}, {transform_indices = @transform_3, window_bounds = array<i64: 2, 256>}]} {
    %c0 = arith.constant 0 : index
    %c0_0 = arith.constant 0 : index
    %c0_1 = arith.constant 0 : index
    %0 = vector.load %arg3[%c0, %c0_0, %c0_1] : memref<2x4x256xf32, #tpu.memory_space<vmem>>, vector<2x4x256xf32>
    %c0_2 = arith.constant 0 : index
    %c0_3 = arith.constant 0 : index
    %1 = vector.load %arg2[%c0_2, %c0_3] : memref<2x4xf32, #tpu.memory_space<vmem>>, vector<2x4xf32>
    %2 = vector.shape_cast %1 : vector<2x4xf32> to vector<2x4x1xf32>
    %3 = vector.broadcast %2 : vector<2x4x1xf32> to vector<2x4x256xf32>
    %4 = arith.mulf %0, %3 : vector<2x4x256xf32>
    %cst = arith.constant dense<0.000000e+00> : vector<2x256xf32>
    %5 = vector.multi_reduction <add>, %4, %cst [1] : vector<2x4x256xf32> to vector<2x256xf32>
    %c0_4 = arith.constant 0 : index
    %c0_5 = arith.constant 0 : index
    %6 = memref.load %arg4[%c0_4, %c0_5] : memref<1x1xf32, #tpu.memory_space<smem>>
    %7 = vector.broadcast %6 : f32 to vector<2x256xf32>
    %8 = arith.addf %5, %7 : vector<2x256xf32>
    %c0_6 = arith.constant 0 : index
    %c0_7 = arith.constant 0 : index
    %9 = vector.load %arg5[%c0_6, %c0_7] : memref<2x256xf32, #tpu.memory_space<vmem>>, vector<2x256xf32>
    tpu.vector_store %arg5[%c0_6, %c0_7], %8 {strides = array<i32>} : memref<2x256xf32, #tpu.memory_space<vmem>>, vector<2x256xf32>,
    return
  }
  func.func @transform_0(%arg0: i32, %arg1: i32) -> (i32, i32) {
    %c0_i32 = arith.constant 0 : i32
    %c0_i32_0 = arith.constant 0 : i32
    return %arg0, %c0_i32 : i32, i32
  }
  func.func @transform_1(%arg0: i32, %arg1: i32) -> (i32, i32, i32) {
    %c0_i32 = arith.constant 0 : i32
    %c0_i32_0 = arith.constant 0 : i32
    return %arg0, %c0_i32, %arg1 : i32, i32, i32
  }
  func.func @transform_2(%arg0: i32, %arg1: i32) -> (i32, i32) {
    %c0_i32 = arith.constant 0 : i32
    %c0_i32_0 = arith.constant 0 : i32
    %c0_i32_1 = arith.constant 0 : i32
    return %c0_i32, %c0_i32_0 : i32, i32
  }
  func.func @transform_3(%arg0: i32, %arg1: i32) -> (i32, i32) {
    %c0_i32 = arith.constant 0 : i32
    return %arg0, %arg1 : i32, i32
  }
}

</mosaic_0001>

<llo_original>
// kernel: tpu_custom_call.1
$region0: #{tpu_custom_call.1}
  #allocation0 [shape = 'u32[]', space=smem, size = 0x4, offset = 0x4, fixed_abs, tag = 'smem constant byte address 0x4 - core index']
  #allocation1 [shape = 'u32[144,128]{1,0:T(1,128)}', space=vmem, size = 0x12000, scoped, tag = 'internal scratch']
  #allocation2 [shape = 'f32[1,1]{1,0:T(1,128)S(6)}', space=smem, size = 0x200, scoped, tag = 'scoped memory for tpu_custom_call.1']
  %s0 = inlined_call_operand.vmem [shape: f32[2,4], index: 0, kind: input, shape index: {}]
  %s1 = inlined_call_operand.hbm [shape: f32[2,4,256], index: 1, kind: input, shape index: {}]
  %s2 = inlined_call_operand.<no memory space> [shape: f32[1,1], index: 2, kind: input, shape index: {}]
  %s3 = inlined_call_operand.hbm [shape: f32[2,256], index: 3, kind: output, shape index: {}]
  %s4 = sld [smem:[#allocation0]]
  $region26: #{tpu_custom_call.1} parent=0
    _
  %s6 = ssub.s32 1, %s4
  %s7 = scalar_select 0, %s6, %s4
  %8 = sst [smem:[#allocation2]] %s2
  $region1: #{tpu_custom_call.1} parent=0
    #allocation3 [shape = 'u8[8192]{0}', space=vmem, size = 0x2000, scoped, tag = 'input window, operand 1, single buffered']
    #allocation4 [shape = 's32[1]{0}', space=sflag, size = 0x4, scoped, tag = 'scoped memory for tpu_custom_call.1']
    #allocation5 [shape = 's32[1]{0}', space=sflag, size = 0x4, scoped, tag = 'scoped memory for tpu_custom_call.1']
    #allocation6 [shape = 'u8[2048]{0}', space=vmem, size = 0x800, scoped, tag = 'output window, operand 0, single buffered']
    %9 = vsyncpa [#allocation4], 0
    %10 = vsyncpa [#allocation5], 0
    // Predicated region
    $region2: #{tpu_custom_call.1} parent=1 // pred_check
      _
    $region3: #{tpu_custom_call.1} parent=1 // pred_check_branch
      %12 = sbr.rel (0) target = $region5
    $region4: #{tpu_custom_call.1} parent=1 // pred_region
      _
    $region5: #{tpu_custom_call.1} parent=1 // pred_fallthru
      _
    // Predicated region
    $region6: #{tpu_custom_call.1} parent=1 // pred_check
      _
    $region7: #{tpu_custom_call.1} parent=1 // pred_check_branch
      %14 = sbr.rel (0) target = $region9
    $region8: #{tpu_custom_call.1} parent=1 // pred_region
      %s16 = ssub.s32 256, 256
      %17 = vsyncadd [#allocation4], %s16
      %s18 = sshll.u32 [#allocation3], 4
      %s19 = int_to_ptr.vmem [resolvable:$true] %s18
      %24 = dma.hbm_to_vmem [thread:$0]  %s1, 256, %s19, [#allocation4], 128, 128, 8
    $region9: #{tpu_custom_call.1} parent=1 // pred_fallthru
      _
    // Predicated region
    $region10: #{tpu_custom_call.1} parent=1 // pred_check
      _
    $region11: #{tpu_custom_call.1} parent=1 // pred_check_branch
      %26 = sbr.rel (0) target = $region13
    $region12: #{tpu_custom_call.1} parent=1 // pred_region
      _
    $region13: #{tpu_custom_call.1} parent=1 // pred_fallthru
      _
    // Predicated region
    $region14: #{tpu_custom_call.1} parent=1 // pred_check
      _
    $region15: #{tpu_custom_call.1} parent=1 // pred_check_branch
      %28 = sbr.rel (0) target = $region17
    $region16: #{tpu_custom_call.1} parent=1 // pred_region
      %29 = dma.done [#allocation4], 256
    $region17: #{tpu_custom_call.1} parent=1 // pred_fallthru
      _
    %v30 = vld [vmem:[#allocation3] sm:$0xff]
    %v31 = vld [vmem:[#allocation3 + $0x8] sm:$0xff]
    %v32 = vld [vmem:[%s0] sm:$0x3]
    %v33 = vlaneseq
    %v34 = vshrl.u32 %v33, 7
    %v35 = vsub.s32 0, %v34
    %v36 = vrot.slane %v32, %v35
    %38 = vbcast.lane.b32.xlu0 %v36, 256
    %v39 = vpop.permute.xlu0 %38
    %v40 = vlaneseq
    %v41 = vshrl.u32 %v40, 7
    %v42 = vsub.s32 1, %v41
    %v43 = vrot.slane %v32, %v42
    %45 = vbcast.lane.b32.xlu0 %v43, 256
    %v46 = vpop.permute.xlu0 %45
    %v50 = vunpack.c.l.s4 839922192
    %v51 = vunpack.c.0.s8 %v50
    %v52 = vlaneseq
    %v53 = vshrl.u32 %v52, 7
    %v54 = vsub.s32 %v51, %v53
    %v55 = vrot.slane %v39, %v54
    %v57 = vunpack.c.l.s4 839922192
    %v58 = vunpack.c.0.s8 %v57
    %v59 = vlaneseq
    %v60 = vshrl.u32 %v59, 7
    %v61 = vsub.s32 %v58, %v60
    %v62 = vrot.slane %v46, %v61
    %v65 = vmul.f32 %v30, %v55
    %v66 = vmul.f32 %v31, %v62
    %v69 = vcombine.high %v65, %v65
    %v70 = vcombine.high %v66, %v66
    %vm73 = vcmask 1043456
    %v74 = vsel %vm73, %v65, 0.0
    %v75 = vrot.slane %v74, 4
    %v76 = vadd.f32 %v74, %v75
    %v77 = vrot.slane %v76, 2
    %v78 = vadd.f32 %v76, %v77
    %v79 = vrot.slane %v78, 1
    %v80 = vadd.f32 %v78, %v79
    %v81 = vsel %vm73, %v69, 0.0
    %v82 = vrot.slane %v81, 4
    %v83 = vadd.f32 %v81, %v82
    %v84 = vrot.slane %v83, 2
    %v85 = vadd.f32 %v83, %v84
    %v86 = vrot.slane %v85, 1
    %v87 = vadd.f32 %v85, %v86
    %v88 = vsel %vm73, %v66, 0.0
    %v89 = vrot.slane %v88, 4
    %v90 = vadd.f32 %v88, %v89
    %v91 = vrot.slane %v90, 2
    %v92 = vadd.f32 %v90, %v91
    %v93 = vrot.slane %v92, 1
    %v94 = vadd.f32 %v92, %v93
    %v95 = vsel %vm73, %v70, 0.0
    %v96 = vrot.slane %v95, 4
    %v97 = vadd.f32 %v95, %v96
    %v98 = vrot.slane %v97, 2
    %v99 = vadd.f32 %v97, %v98
    %v100 = vrot.slane %v99, 1
    %v101 = vadd.f32 %v99, %v100
    %s102 = sld [smem:[#allocation2]]
    %v103 = vstv %s102
    %v104 = vadd.f32 %v80, %v103
    %v105 = vadd.f32 %v87, %v103
    %v106 = vadd.f32 %v94, %v103
    %v107 = vadd.f32 %v101, %v103
    %v112 = vcombine.low %v104, %v105
    %v114 = vunpack.c.l.s4 1983009808
    %v115 = vunpack.c.0.s8 %v114
    %v116 = vlaneseq
    %v117 = vshrl.u32 %v116, 7
    %v118 = vsub.s32 %v115, %v117
    %v119 = vrot.slane %v112, %v118
    %v120 = vcombine.low %v106, %v107
    %v122 = vunpack.c.l.s4 1983009808
    %v123 = vunpack.c.0.s8 %v122
    %v124 = vlaneseq
    %v125 = vshrl.u32 %v124, 7
    %v126 = vsub.s32 %v123, %v125
    %v127 = vrot.slane %v120, %v126
    %vm128 = vcmask 1044484
    %v129 = vsel %vm128, %v119, %v119
    %vm130 = vcmask 1046534
    %v131 = vsel %vm130, %v119, %v129
    %v132 = vrot.slane %v127, 7
    %vm133 = vcmask 1041409
    %v134 = vsel %vm133, %v132, %v131
    %vm135 = vcmask 1043459
    %v136 = vsel %vm135, %v132, %v134
    %vm137 = vcmask 1045509
    %v138 = vsel %vm137, %v132, %v136
    %vm139 = vcmask 1047559
    %v140 = vsel %vm139, %v132, %v138
    %142 = vst [vmem:[#allocation6] sm:$0xf] %v140
    // Predicated region
    $region18: #{tpu_custom_call.1} parent=1 // pred_check
      _
    $region19: #{tpu_custom_call.1} parent=1 // pred_check_branch
      %144 = sbr.rel (0) target = $region21
    $region20: #{tpu_custom_call.1} parent=1 // pred_region
      %s146 = ssub.s32 64, 64
      %147 = vsyncadd [#allocation5], %s146
      %s149 = sshll.u32 [#allocation6], 4
      %s150 = int_to_ptr.vmem [resolvable:$true] %s149
      %152 = dma.vmem_to_hbm [thread:$0]  %s150, 64, %s3, [#allocation5]
    $region21: #{tpu_custom_call.1} parent=1 // pred_fallthru
      _
    // Predicated region
    $region22: #{tpu_custom_call.1} parent=1 // pred_check
      _
    $region23: #{tpu_custom_call.1} parent=1 // pred_check_branch
      %154 = sbr.rel (0) target = $region25
    $region24: #{tpu_custom_call.1} parent=1 // pred_region
      %155 = dma.done [#allocation5], 64
    $region25: #{tpu_custom_call.1} parent=1 // pred_fallthru
      _
    %156 = vsyncpa [#allocation4], 1
    %157 = vsyncpa [#allocation5], 1

</llo_original>
